<compile_context>
chip_gen: v5e
topology: v5e:2x2
jax: 0.10.0
libtpu: 0.0.40
codegen_flags: <defaults>
</compile_context>

<pallas_src>
import jax
import jax.numpy as jnp
from jax.experimental import pallas as pl
from jax.experimental.pallas import tpu as pltpu


def _round_up(v, m):
    return (v + m - 1) // m * m


def _pick_block_b(b):
    # The gate block is (block_b, c): its sublane dim must be a multiple of 8
    # or equal to the full batch, so only tile the batch when it splits into 8s.
    return 8 if (b > 8 and b % 8 == 0) else b


def _pick_block_hw(hw, block_b, c, itemsize, target_bytes=2 * 1024 * 1024):
    # Largest lane-dense (multiple-of-128) hw tile keeping one x block around
    # ~2 MiB: >=1 MiB blocks hit 85%+ of HBM roofline, and double-buffered
    # in+out blocks still fit v5e's 16 MiB scoped VMEM and v7x's 32 MiB scoped.
    hw128 = _round_up(hw, 128)
    budget = max(128, (target_bytes // (block_b * c * itemsize)) // 128 * 128)
    return min(hw128, budget)


def _se_reduce_excite_kernel(x_ref, w1t_ref, w2t_ref, gate_ref):
    """Pooled-sum reduction over hw tiles + excitation MLP at the last tile.

    x_ref:    (block_b, c, block_hw)  streamed spatial tile
    w1t_ref:  (c, c_red)              W1^T pre-scaled by 1/hw (folds the mean)
    w2t_ref:  (c_red, c)              W2^T
    gate_ref: (block_b, c)            resident across the hw axis; used as the
                                      accumulator, then overwritten with gate.
    """
    j = pl.program_id(1)

    @pl.when(j == 0)
    def _init():
        gate_ref[...] = jnp.zeros_like(gate_ref)

    # Accumulate the spatial sum in f32 (zero padding contributes nothing).
    gate_ref[...] += jnp.sum(x_ref[...].astype(jnp.float32), axis=-1)

    @pl.when(j == pl.num_programs(1) - 1)
    def _excite():
        y = gate_ref[...]                                       # (bb, c) sum
        h = jnp.dot(y, w1t_ref[...], preferred_element_type=jnp.float32)
        h = jnp.maximum(h, 0.0)                                 # ReLU
        s = jnp.dot(h, w2t_ref[...], preferred_element_type=jnp.float32)
        gate_ref[...] = jax.nn.sigmoid(s)                       # (bb, c) gate


def _se_scale_kernel(x_ref, gate_ref, o_ref):
    """Channel-wise scaling of the streamed x tiles by the broadcast gate."""
    o_ref[...] = x_ref[...] * gate_ref[...][:, :, None].astype(x_ref.dtype)


def prepare_se_weights(w1, w2, hw):
    """One-time weight prep outside the hot path.

    w1: (c_red, c) first nn.Linear weight (out, in), bias-free.
    w2: (c, c_red) second nn.Linear weight (out, in), bias-free.
    Folds the 1/hw of the average pool into the pre-transposed first weight.
    """
    w1t_scaled = jnp.transpose(w1).astype(jnp.float32) * (1.0 / float(hw))
    w2t = jnp.transpose(w2).astype(jnp.float32)
    return w1t_scaled, w2t


@jax.jit
def se_layer(x, w1t_scaled, w2t):
    """SELayer forward: x * sigmoid(W2 @ relu(W1 @ avgpool(x))), NCHW layout.

    x:          (b, c, m, n)
    w1t_scaled: (c, c_red)   from prepare_se_weights
    w2t:        (c_red, c)   from prepare_se_weights
    Returns:    (b, c, m, n), same dtype as x.
    """
    b, c, m, n = x.shape
    hw = m * n

    block_b = _pick_block_b(b)
    block_hw = _pick_block_hw(hw, block_b, c, jnp.dtype(x.dtype).itemsize)
    hw_pad = _round_up(hw, block_hw)

    x3 = x.reshape(b, c, hw)
    if hw_pad != hw:
        # Zero-pad so every tile is full and lane-dense (multiple of 128);
        # zeros do not perturb the pooled sum, and the pad is sliced off below.
        x3 = jnp.pad(x3, ((0, 0), (0, 0), (0, hw_pad - hw)))

    grid = (b // block_b, hw_pad // block_hw)

    x_spec = pl.BlockSpec((block_b, c, block_hw), lambda i, j: (i, 0, j))
    gate_spec = pl.BlockSpec((block_b, c), lambda i, j: (i, 0))

    # ---- Kernel 1: pooled sum (reduction over hw tiles) + excitation MLP. ----
    gate = pl.pallas_call(
        _se_reduce_excite_kernel,
        out_shape=jax.ShapeDtypeStruct((b, c), jnp.float32),
        grid_spec=pltpu.PrefetchScalarGridSpec(
            num_scalar_prefetch=0,
            grid=grid,
            in_specs=[
                x_spec,
                pl.BlockSpec(w1t_scaled.shape, lambda i, j: (0, 0)),
                pl.BlockSpec(w2t.shape, lambda i, j: (0, 0)),
            ],
            out_specs=gate_spec,
        ),
        compiler_params=pltpu.CompilerParams(
            dimension_semantics=("parallel", "arbitrary")),
    )(x3, w1t_scaled, w2t)

    # ---- Kernel 2: re-stream x and scale by the broadcast per-channel gate. --
    # NOTE: if the caller can donate x (doesn't need it afterwards), adding
    # input_output_aliases={0: 0} here writes the result in place and saves the
    # output HBM allocation; omitted since this demo keeps x for the reference.
    out = pl.pallas_call(
        _se_scale_kernel,
        out_shape=jax.ShapeDtypeStruct((b, c, hw_pad), x.dtype),
        grid_spec=pltpu.PrefetchScalarGridSpec(
            num_scalar_prefetch=0,
            grid=grid,
            in_specs=[x_spec, gate_spec],
            out_specs=x_spec,
        ),
        compiler_params=pltpu.CompilerParams(
            dimension_semantics=("parallel", "parallel")),
    )(x3, gate)

    if hw_pad != hw:
        out = out[:, :, :hw]
    return out.reshape(b, c, m, n)


def _reference(x, w1, w2):
    """Pure-JAX reference matching the PyTorch SELayer."""
    y = jnp.mean(x, axis=(2, 3))                    # avg_pool -> (b, c)
    y = jnp.maximum(y @ w1.T, 0.0)                  # Linear + ReLU
    y = jax.nn.sigmoid(y @ w2.T)                    # Linear + Sigmoid
    return x * y[:, :, None, None]


def _run_case(key, b, c, m, n, reduction):
    c_red = c // reduction
    kx, k1, k2 = jax.random.split(key, 3)
    x = jax.random.normal(kx, (b, c, m, n), dtype=jnp.float32)
    w1 = jax.random.normal(k1, (c_red, c), dtype=jnp.float32) * (1.0 / jnp.sqrt(c))
    w2 = jax.random.normal(k2, (c, c_red), dtype=jnp.float32) * (1.0 / jnp.sqrt(c_red))

    w1t_scaled, w2t = prepare_se_weights(w1, w2, m * n)
    out = jax.block_until_ready(se_layer(x, w1t_scaled, w2t))

    ref = _reference(x, w1, w2)
    assert out.shape == (b, c, m, n)
    assert jnp.allclose(out, ref, atol=1e-5, rtol=1e-5), float(
        jnp.max(jnp.abs(out - ref)))


if __name__ == "__main__":
    key = jax.random.PRNGKey(0)
    k0, k1 = jax.random.split(key)

    # SELayer(channel=32, reduction=16) on a small 16x16 map (hw = 256, 1 tile).
    _run_case(k0, b=2, c=32, m=16, n=16, reduction=16)

    # A non-128-multiple spatial size that exercises zero-padding and a
    # multi-tile hw reduction (hw = 3136 -> padded to 4096, 2 hw tiles).
    _run_case(k1, b=4, c=64, m=56, n=56, reduction=16)

    print("KERNEL_OK")
</pallas_src>

<mosaic_0001>
module attributes {stable_mosaic.version = 11 : i64} {
  func.func @_se_reduce_excite_kernel(%arg0: i32, %arg1: i32, %arg2: memref<2x32x256xf32, #tpu.memory_space<vmem>>, %arg3: memref<32x2xf32, #tpu.memory_space<vmem>>, %arg4: memref<2x32xf32, #tpu.memory_space<vmem>>, %arg5: memref<2x32xf32, #tpu.memory_space<vmem>>) attributes {dimension_semantics = [#tpu.dimension_semantics<parallel>, #tpu.dimension_semantics<arbitrary>], iteration_bounds = array<i64: 1, 1>, scalar_prefetch = 0 : i64, scratch_operands = 0 : i64, tpu.core_type = #tpu.core_type<tc>, window_params = [{transform_indices = @transform_0, window_bounds = array<i64: 2, 32, 256>}, {pipeline_mode = #tpu.pipeline_mode<synchronous>, transform_indices = @transform_1, window_bounds = array<i64: 32, 2>}, {pipeline_mode = #tpu.pipeline_mode<synchronous>, transform_indices = @transform_2, window_bounds = array<i64: 2, 32>}, {transform_indices = @transform_3, window_bounds = array<i64: 2, 32>}]} {
    %c0_i32 = arith.constant 0 : i32
    %0 = arith.cmpi eq, %arg1, %c0_i32 : i32
    %1 = arith.extui %0 : i1 to i32
    %c0_i32_0 = arith.constant 0 : i32
    %2 = arith.cmpi ne, %1, %c0_i32_0 : i32
    scf.if %2 {
      %cst_9 = arith.constant 0.000000e+00 : f32
      %11 = vector.broadcast %cst_9 : f32 to vector<2x32xf32>
      %c0_10 = arith.constant 0 : index
      %c0_11 = arith.constant 0 : index
      %12 = vector.load %arg5[%c0_10, %c0_11] : memref<2x32xf32, #tpu.memory_space<vmem>>, vector<2x32xf32>
      tpu.vector_store %arg5[%c0_10, %c0_11], %11 {strides = array<i32>} : memref<2x32xf32, #tpu.memory_space<vmem>>, vector<2x32xf32>,
    } else {
    }
    %c0 = arith.constant 0 : index
    %c0_1 = arith.constant 0 : index
    %3 = vector.load %arg5[%c0, %c0_1] : memref<2x32xf32, #tpu.memory_space<vmem>>, vector<2x32xf32>
    %c0_2 = arith.constant 0 : index
    %c0_3 = arith.constant 0 : index
    %c0_4 = arith.constant 0 : index
    %4 = vector.load %arg2[%c0_2, %c0_3, %c0_4] : memref<2x32x256xf32, #tpu.memory_space<vmem>>, vector<2x32x256xf32>
    %cst = arith.constant dense<0.000000e+00> : vector<2x32xf32>
    %5 = vector.multi_reduction <add>, %4, %cst [2] : vector<2x32x256xf32> to vector<2x32xf32>
    %6 = arith.addf %3, %5 : vector<2x32xf32>
    %c0_5 = arith.constant 0 : index
    %c0_6 = arith.constant 0 : index
    %7 = vector.load %arg5[%c0_5, %c0_6] : memref<2x32xf32, #tpu.memory_space<vmem>>, vector<2x32xf32>
    tpu.vector_store %arg5[%c0_5, %c0_6], %6 {strides = array<i32>} : memref<2x32xf32, #tpu.memory_space<vmem>>, vector<2x32xf32>,
    %c0_i32_7 = arith.constant 0 : i32
    %8 = arith.cmpi eq, %arg1, %c0_i32_7 : i32
    %9 = arith.extui %8 : i1 to i32
    %c0_i32_8 = arith.constant 0 : i32
    %10 = arith.cmpi ne, %9, %c0_i32_8 : i32
    scf.if %10 {
      %c0_9 = arith.constant 0 : index
      %c0_10 = arith.constant 0 : index
      %11 = vector.load %arg5[%c0_9, %c0_10] : memref<2x32xf32, #tpu.memory_space<vmem>>, vector<2x32xf32>
      %c0_11 = arith.constant 0 : index
      %c0_12 = arith.constant 0 : index
      %12 = vector.load %arg3[%c0_11, %c0_12] : memref<32x2xf32, #tpu.memory_space<vmem>>, vector<32x2xf32>
      %cst_13 = arith.constant dense<0.000000e+00> : vector<2x2xf32>
      %13 = tpu.matmul %11, %12, %cst_13 {dimension_numbers = #tpu.dot_dimension_numbers<[1], [0], [0], [1], [0, 0, 1, 1], [], []>} : vector<2x32xf32>, vector<32x2xf32>, vector<2x2xf32> -> vector<2x2xf32>
      %cst_14 = arith.constant 0.000000e+00 : f32
      %14 = vector.broadcast %cst_14 : f32 to vector<2x2xf32>
      %15 = arith.maximumf %13, %14 : vector<2x2xf32>
      %c0_15 = arith.constant 0 : index
      %c0_16 = arith.constant 0 : index
      %16 = vector.load %arg4[%c0_15, %c0_16] : memref<2x32xf32, #tpu.memory_space<vmem>>, vector<2x32xf32>
      %cst_17 = arith.constant dense<0.000000e+00> : vector<2x32xf32>
      %17 = tpu.matmul %15, %16, %cst_17 {dimension_numbers = #tpu.dot_dimension_numbers<[1], [0], [0], [1], [0, 0, 1, 1], [], []>} : vector<2x2xf32>, vector<2x32xf32>, vector<2x32xf32> -> vector<2x32xf32>
      %18 = arith.negf %17 : vector<2x32xf32>
      %19 = math.exp %18 : vector<2x32xf32>
      %cst_18 = arith.constant 1.000000e+00 : f32
      %20 = vector.broadcast %cst_18 : f32 to vector<2x32xf32>
      %21 = arith.addf %20, %19 : vector<2x32xf32>
      %22 = arith.divf %20, %21 : vector<2x32xf32>
      %c0_19 = arith.constant 0 : index
      %c0_20 = arith.constant 0 : index
      %23 = vector.load %arg5[%c0_19, %c0_20] : memref<2x32xf32, #tpu.memory_space<vmem>>, vector<2x32xf32>
      tpu.vector_store %arg5[%c0_19, %c0_20], %22 {strides = array<i32>} : memref<2x32xf32, #tpu.memory_space<vmem>>, vector<2x32xf32>,
    } else {
    }
    return
  }
  func.func @transform_0(%arg0: i32, %arg1: i32) -> (i32, i32, i32) {
    %c0_i32 = arith.constant 0 : i32
    %c0_i32_0 = arith.constant 0 : i32
    return %arg0, %c0_i32, %arg1 : i32, i32, i32
  }
  func.func @transform_1(%arg0: i32, %arg1: i32) -> (i32, i32) {
    %c0_i32 = arith.constant 0 : i32
    %c0_i32_0 = arith.constant 0 : i32
    %c0_i32_1 = arith.constant 0 : i32
    return %c0_i32, %c0_i32_0 : i32, i32
  }
  func.func @transform_2(%arg0: i32, %arg1: i32) -> (i32, i32) {
    %c0_i32 = arith.constant 0 : i32
    %c0_i32_0 = arith.constant 0 : i32
    %c0_i32_1 = arith.constant 0 : i32
    return %c0_i32, %c0_i32_0 : i32, i32
  }
  func.func @transform_3(%arg0: i32, %arg1: i32) -> (i32, i32) {
    %c0_i32 = arith.constant 0 : i32
    %c0_i32_0 = arith.constant 0 : i32
    return %arg0, %c0_i32 : i32, i32
  }
}

module attributes {stable_mosaic.version = 11 : i64} {
  func.func @_se_scale_kernel(%arg0: i32, %arg1: i32, %arg2: memref<2x32x256xf32, #tpu.memory_space<vmem>>, %arg3: memref<2x32xf32, #tpu.memory_space<vmem>>, %arg4: memref<2x32x256xf32, #tpu.memory_space<vmem>>) attributes {dimension_semantics = [#tpu.dimension_semantics<parallel>, #tpu.dimension_semantics<parallel>], iteration_bounds = array<i64: 1, 1>, scalar_prefetch = 0 : i64, scratch_operands = 0 : i64, tpu.core_type = #tpu.core_type<tc>, window_params = [{transform_indices = @transform_0, window_bounds = array<i64: 2, 32, 256>}, {transform_indices = @transform_1, window_bounds = array<i64: 2, 32>}, {transform_indices = @transform_2, window_bounds = array<i64: 2, 32, 256>}]} {
    %c0 = arith.constant 0 : index
    %c0_0 = arith.constant 0 : index
    %c0_1 = arith.constant 0 : index
    %0 = vector.load %arg2[%c0, %c0_0, %c0_1] : memref<2x32x256xf32, #tpu.memory_space<vmem>>, vector<2x32x256xf32>
    %c0_2 = arith.constant 0 : index
    %c0_3 = arith.constant 0 : index
    %1 = vector.load %arg3[%c0_2, %c0_3] : memref<2x32xf32, #tpu.memory_space<vmem>>, vector<2x32xf32>
    %2 = vector.shape_cast %1 : vector<2x32xf32> to vector<2x32x1xf32>
    %3 = vector.broadcast %2 : vector<2x32x1xf32> to vector<2x32x256xf32>
    %4 = arith.mulf %0, %3 : vector<2x32x256xf32>
    %c0_4 = arith.constant 0 : index
    %c0_5 = arith.constant 0 : index
    %c0_6 = arith.constant 0 : index
    %5 = vector.load %arg4[%c0_4, %c0_5, %c0_6] : memref<2x32x256xf32, #tpu.memory_space<vmem>>, vector<2x32x256xf32>
    tpu.vector_store %arg4[%c0_4, %c0_5, %c0_6], %4 {strides = array<i32>} : memref<2x32x256xf32, #tpu.memory_space<vmem>>, vector<2x32x256xf32>,
    return
  }
  func.func @transform_0(%arg0: i32, %arg1: i32) -> (i32, i32, i32) {
    %c0_i32 = arith.constant 0 : i32
    %c0_i32_0 = arith.constant 0 : i32
    return %arg0, %c0_i32, %arg1 : i32, i32, i32
  }
  func.func @transform_1(%arg0: i32, %arg1: i32) -> (i32, i32) {
    %c0_i32 = arith.constant 0 : i32
    %c0_i32_0 = arith.constant 0 : i32
    return %arg0, %c0_i32 : i32, i32
  }
  func.func @transform_2(%arg0: i32, %arg1: i32) -> (i32, i32, i32) {
    %c0_i32 = arith.constant 0 : i32
    %c0_i32_0 = arith.constant 0 : i32
    return %arg0, %c0_i32, %arg1 : i32, i32, i32
  }
}

</mosaic_0001>

<llo_original>
// kernel: se_layer.3
$region0: #{se_layer.3}
  #allocation0 [shape = 'u32[]', space=smem, size = 0x4, offset = 0x4, fixed_abs, tag = 'smem constant byte address 0x4 - core index']
  #allocation1 [shape = 'u32[72,128]{1,0:T(1,128)}', space=vmem, size = 0x9000, scoped, tag = 'internal scratch']
  %s0 = inlined_call_operand.vmem [shape: f32[2,32,256], index: 0, kind: input, shape index: {}]
  %s1 = inlined_call_operand.vmem [shape: f32[2,32], index: 1, kind: input, shape index: {}]
  %s2 = inlined_call_operand.vmem [shape: f32[2,32,256], index: 2, kind: output, shape index: {}]
  %s3 = sld [smem:[#allocation0]]
  $region18: #{se_layer.3} parent=0
    _
  %s5 = ssub.s32 1, %s3
  %s6 = scalar_select 0, %s5, %s3
  // Predicated region
  $region2: #{se_layer.3} parent=0 // pred_check
    _
  $region3: #{se_layer.3} parent=0 // pred_check_branch
    %8 = sbr.rel (0) target = $region5
  $region4: #{se_layer.3} parent=0 // pred_region
    _
  $region5: #{se_layer.3} parent=0 // pred_fallthru
    _
  // Predicated region
  $region6: #{se_layer.3} parent=0 // pred_check
    _
  $region7: #{se_layer.3} parent=0 // pred_check_branch
    %10 = sbr.rel (0) target = $region9
  $region8: #{se_layer.3} parent=0 // pred_region
    _
  $region9: #{se_layer.3} parent=0 // pred_fallthru
    _
  %v11 = vld [vmem:[%s0] sm:$0xff]
  %v12 = vld [vmem:[%s0 + $0x8] sm:$0xff]
  %v13 = vld [vmem:[%s0 + $0x10] sm:$0xff]
  %v14 = vld [vmem:[%s0 + $0x18] sm:$0xff]
  %v15 = vld [vmem:[%s0 + $0x20] sm:$0xff]
  %v16 = vld [vmem:[%s0 + $0x28] sm:$0xff]
  %v17 = vld [vmem:[%s0 + $0x30] sm:$0xff]
  %v18 = vld [vmem:[%s0 + $0x38] sm:$0xff]
  %v19 = vld [vmem:[%s0 + $0x40] sm:$0xff]
  %v20 = vld [vmem:[%s0 + $0x48] sm:$0xff]
  %v21 = vld [vmem:[%s0 + $0x50] sm:$0xff]
  %v22 = vld [vmem:[%s0 + $0x58] sm:$0xff]
  %v23 = vld [vmem:[%s0 + $0x60] sm:$0xff]
  %v24 = vld [vmem:[%s0 + $0x68] sm:$0xff]
  %v25 = vld [vmem:[%s0 + $0x70] sm:$0xff]
  %v26 = vld [vmem:[%s0 + $0x78] sm:$0xff]
  %v27 = vld [vmem:[%s1] sm:$0x3]
  %v28 = vperm.slane %v27, 0
  %v29 = vlaneseq
  %v30 = vshrl.u32 %v29, 7
  %32 = vset.pattern.permute.xlu0 %v30
  %33 = vperm.xlu0 %32, %v28
  %v34 = vpop.permute.xlu0 %33
  %v35 = vlaneseq
  %v36 = vshrl.u32 %v35, 7
  %v37 = vadd.s32 %v36, 8
  %38 = vset.pattern.permute.xlu0 %v37
  %39 = vperm.xlu0 %38, %v28
  %v40 = vpop.permute.xlu0 %39
  %v41 = vlaneseq
  %v42 = vshrl.u32 %v41, 7
  %v43 = vadd.s32 %v42, 16
  %44 = vset.pattern.permute.xlu0 %v43
  %45 = vperm.xlu0 %44, %v28
  %v46 = vpop.permute.xlu0 %45
  %v47 = vlaneseq
  %v48 = vshrl.u32 %v47, 7
  %v49 = vadd.s32 %v48, 24
  %50 = vset.pattern.permute.xlu0 %v49
  %51 = vperm.xlu0 %50, %v28
  %v52 = vpop.permute.xlu0 %51
  %v53 = vperm.slane %v27, 1
  %v54 = vlaneseq
  %v55 = vshrl.u32 %v54, 7
  %57 = vset.pattern.permute.xlu0 %v55
  %58 = vperm.xlu0 %57, %v53
  %v59 = vpop.permute.xlu0 %58
  %v60 = vlaneseq
  %v61 = vshrl.u32 %v60, 7
  %v62 = vadd.s32 %v61, 8
  %63 = vset.pattern.permute.xlu0 %v62
  %64 = vperm.xlu0 %63, %v53
  %v65 = vpop.permute.xlu0 %64
  %v66 = vlaneseq
  %v67 = vshrl.u32 %v66, 7
  %v68 = vadd.s32 %v67, 16
  %69 = vset.pattern.permute.xlu0 %v68
  %70 = vperm.xlu0 %69, %v53
  %v71 = vpop.permute.xlu0 %70
  %v72 = vlaneseq
  %v73 = vshrl.u32 %v72, 7
  %v74 = vadd.s32 %v73, 24
  %75 = vset.pattern.permute.xlu0 %v74
  %76 = vperm.xlu0 %75, %v53
  %v77 = vpop.permute.xlu0 %76
  %v78 = vmul.f32 %v11, %v34
  %v79 = vmul.f32 %v12, %v34
  %v80 = vmul.f32 %v13, %v40
  %v81 = vmul.f32 %v14, %v40
  %v82 = vmul.f32 %v15, %v46
  %v83 = vmul.f32 %v16, %v46
  %v84 = vmul.f32 %v17, %v52
  %v85 = vmul.f32 %v18, %v52
  %v86 = vmul.f32 %v19, %v59
  %v87 = vmul.f32 %v20, %v59
  %v88 = vmul.f32 %v21, %v65
  %v89 = vmul.f32 %v22, %v65
  %v90 = vmul.f32 %v23, %v71
  %v91 = vmul.f32 %v24, %v71
  %v92 = vmul.f32 %v25, %v77
  %v93 = vmul.f32 %v26, %v77
  %94 = vst [vmem:[%s2] sm:$0xff] %v78
  %95 = vst [vmem:[%s2 + $0x8] sm:$0xff] %v79
  %96 = vst [vmem:[%s2 + $0x10] sm:$0xff] %v80
  %97 = vst [vmem:[%s2 + $0x18] sm:$0xff] %v81
  %98 = vst [vmem:[%s2 + $0x20] sm:$0xff] %v82
  %99 = vst [vmem:[%s2 + $0x28] sm:$0xff] %v83
  %100 = vst [vmem:[%s2 + $0x30] sm:$0xff] %v84
  %101 = vst [vmem:[%s2 + $0x38] sm:$0xff] %v85
  %102 = vst [vmem:[%s2 + $0x40] sm:$0xff] %v86
  %103 = vst [vmem:[%s2 + $0x48] sm:$0xff] %v87
  %104 = vst [vmem:[%s2 + $0x50] sm:$0xff] %v88
  %105 = vst [vmem:[%s2 + $0x58] sm:$0xff] %v89
  %106 = vst [vmem:[%s2 + $0x60] sm:$0xff] %v90
  %107 = vst [vmem:[%s2 + $0x68] sm:$0xff] %v91
  %108 = vst [vmem:[%s2 + $0x70] sm:$0xff] %v92
  %109 = vst [vmem:[%s2 + $0x78] sm:$0xff] %v93
  // Predicated region
  $region10: #{se_layer.3} parent=0 // pred_check
    _
  $region11: #{se_layer.3} parent=0 // pred_check_branch
    %111 = sbr.rel (0) target = $region13
  $region12: #{se_layer.3} parent=0 // pred_region
    _
  $region13: #{se_layer.3} parent=0 // pred_fallthru
    _
  // Predicated region
  $region14: #{se_layer.3} parent=0 // pred_check
    _
  $region15: #{se_layer.3} parent=0 // pred_check_branch
    %113 = sbr.rel (0) target = $region17
  $region16: #{se_layer.3} parent=0 // pred_region
    _
  $region17: #{se_layer.3} parent=0 // pred_fallthru
    _

// kernel: se_layer.2
$region0: #{se_layer.2}
  #allocation0 [shape = 'u32[]', space=smem, size = 0x4, offset = 0x4, fixed_abs, tag = 'smem constant byte address 0x4 - core index']
  #allocation1 [shape = 'u32[72,128]{1,0:T(1,128)}', space=vmem, size = 0x9000, scoped, tag = 'internal scratch']
  %s0 = inlined_call_operand.vmem [shape: f32[2,32,256], index: 0, kind: input, shape index: {}]
  %s1 = inlined_call_operand.vmem [shape: f32[32,2], index: 1, kind: input, shape index: {}]
  %s2 = inlined_call_operand.vmem [shape: f32[2,32], index: 2, kind: input, shape index: {}]
  %s3 = inlined_call_operand.vmem [shape: f32[2,32], index: 3, kind: output, shape index: {}]
  %s4 = sld [smem:[#allocation0]]
  $region30: #{se_layer.2} parent=0
    _
  %s6 = ssub.s32 1, %s4
  %s7 = scalar_select 0, %s6, %s4
  // Predicated region
  $region2: #{se_layer.2} parent=0 // pred_check
    _
  $region3: #{se_layer.2} parent=0 // pred_check_branch
    %9 = sbr.rel (0) target = $region5
  $region4: #{se_layer.2} parent=0 // pred_region
    _
  $region5: #{se_layer.2} parent=0 // pred_fallthru
    _
  // Predicated region
  $region6: #{se_layer.2} parent=0 // pred_check
    _
  $region7: #{se_layer.2} parent=0 // pred_check_branch
    %11 = sbr.rel (0) target = $region9
  $region8: #{se_layer.2} parent=0 // pred_region
    _
  $region9: #{se_layer.2} parent=0 // pred_fallthru
    _
  // Predicated region
  $region10: #{se_layer.2} parent=0 // pred_check
    _
  $region11: #{se_layer.2} parent=0 // pred_check_branch
    %13 = sbr.rel (0) target = $region13
  $region12: #{se_layer.2} parent=0 // pred_region
    _
  $region13: #{se_layer.2} parent=0 // pred_fallthru
    _
  %p14 = scmp.eq.s32.totalorder 0, 0
  // Predicated region
  $region14: #{se_layer.2} parent=0 // pred_check
    %p15 = pneg %p14
  $region15: #{se_layer.2} parent=0 // pred_check_branch
    %17 = sbr.rel (%p15) target = $region17
  $region16: #{se_layer.2} parent=0 // pred_region
    %vm18 = vcmask 254976
    %19 = vst.msk [vmem:[%s3] sm:$0x3] %vm18, 0.0
  $region17: #{se_layer.2} parent=0 // pred_fallthru
    _
  %v20 = vld [vmem:[%s3] sm:$0x3]
  %v21 = vld [vmem:[%s0] sm:$0xff]
  %v22 = vld [vmem:[%s0 + $0x8] sm:$0xff]
  %v23 = vld [vmem:[%s0 + $0x10] sm:$0xff]
  %v24 = vld [vmem:[%s0 + $0x18] sm:$0xff]
  %v25 = vld [vmem:[%s0 + $0x20] sm:$0xff]
  %v26 = vld [vmem:[%s0 + $0x28] sm:$0xff]
  %v27 = vld [vmem:[%s0 + $0x30] sm:$0xff]
  %v28 = vld [vmem:[%s0 + $0x38] sm:$0xff]
  %v29 = vld [vmem:[%s0 + $0x40] sm:$0xff]
  %v30 = vld [vmem:[%s0 + $0x48] sm:$0xff]
  %v31 = vld [vmem:[%s0 + $0x50] sm:$0xff]
  %v32 = vld [vmem:[%s0 + $0x58] sm:$0xff]
  %v33 = vld [vmem:[%s0 + $0x60] sm:$0xff]
  %v34 = vld [vmem:[%s0 + $0x68] sm:$0xff]
  %v35 = vld [vmem:[%s0 + $0x70] sm:$0xff]
  %v36 = vld [vmem:[%s0 + $0x78] sm:$0xff]
  %v37 = vadd.f32 %v21, %v22
  %38 = vadd.xlane.f32.xlu0 %v37
  %v39 = vpop.xlane.xlu0 %38
  %v40 = vadd.f32 %v23, %v24
  %41 = vadd.xlane.f32.xlu0 %v40
  %v42 = vpop.xlane.xlu0 %41
  %v43 = vadd.f32 %v25, %v26
  %44 = vadd.xlane.f32.xlu0 %v43
  %v45 = vpop.xlane.xlu0 %44
  %v46 = vadd.f32 %v27, %v28
  %47 = vadd.xlane.f32.xlu0 %v46
  %v48 = vpop.xlane.xlu0 %47
  %v49 = vadd.f32 %v29, %v30
  %50 = vadd.xlane.f32.xlu0 %v49
  %v51 = vpop.xlane.xlu0 %50
  %v52 = vadd.f32 %v31, %v32
  %53 = vadd.xlane.f32.xlu0 %v52
  %v54 = vpop.xlane.xlu0 %53
  %v55 = vadd.f32 %v33, %v34
  %56 = vadd.xlane.f32.xlu0 %v55
  %v57 = vpop.xlane.xlu0 %56
  %v58 = vadd.f32 %v35, %v36
  %59 = vadd.xlane.f32.xlu0 %v58
  %v60 = vpop.xlane.xlu0 %59
  %v69 = vlaneseq
  %v70 = vand.u32 %v69, 127
  %v71 = vperm.slane %v39, %v70
  %v72 = vadd.s32 %v70, 4294967288
  %v73 = vperm.slane %v42, %v72
  %vm74 = vcmask 130112
  %v75 = vsel %vm74, %v73, %v71
  %v76 = vadd.s32 %v70, 4294967280
  %v77 = vperm.slane %v45, %v76
  %vm78 = vcmask 195712
  %v79 = vsel %vm78, %v77, %v75
  %v80 = vadd.s32 %v70, 4294967272
  %v81 = vperm.slane %v48, %v80
  %vm82 = vcmask 261312
  %v83 = vsel %vm82, %v81, %v79
  %v84 = vperm.slane %v51, %v70
  %v85 = vperm.slane %v54, %v72
  %v86 = vsel %vm74, %v85, %v84
  %v87 = vperm.slane %v57, %v76
  %v88 = vsel %vm78, %v87, %v86
  %v89 = vperm.slane %v60, %v80
  %v90 = vsel %vm82, %v89, %v88
  %vm91 = vcmask 1041409
  %v92 = vsel %vm91, %v90, %v83
  %v94 = vadd.f32 %v20, %v92
  %vm95 = vcmask 254976
  %96 = vst.msk [vmem:[%s3] sm:$0x3] %vm95, %v94
  // Predicated region
  $region18: #{se_layer.2} parent=0 // pred_check
    %p97 = pneg %p14
  $region19: #{se_layer.2} parent=0 // pred_check_branch
    %99 = sbr.rel (%p97) target = $region21
  $region20: #{se_layer.2} parent=0 // pred_region
    %v100 = vld [vmem:[%s3] sm:$0x3]
    %v101 = vld [vmem:[%s1] sm:$0xff]
    %v102 = vld [vmem:[%s1 + $0x8] sm:$0xff]
    %v103 = vld [vmem:[%s1 + $0x10] sm:$0xff]
    %v104 = vld [vmem:[%s1 + $0x18] sm:$0xff]
    %vm105 = vcmask 261120
    %v107 = vsel %vm105, %v100, 0
    %109 = vmatpush.msra.mxu0 0.0
    %110 = vmatpush.msra.mxu0 0.0
    %111 = vmatpush.msra.mxu0 0.0
    %112 = vmatpush.msra.mxu0 0.0
    %113 = vmatpush.msra.mxu0 0.0
    %114 = vmatpush.msra.mxu0 0.0
    %115 = vmatpush.msra.mxu0 0.0
    %116 = vmatpush.msra.mxu0 0.0
    %117 = vmatpush.msra.mxu0 0.0
    %118 = vmatpush.msra.mxu0 0.0
    %119 = vmatpush.msra.mxu0 0.0
    %120 = vmatpush.msra.mxu0 0.0
    %121 = vmatpush.msra.mxu0 %v104
    %122 = vmatpush.msra.mxu0 %v103
    %123 = vmatpush.msra.mxu0 %v102
    %124 = vmatpush.msra.mxu0 %v101
    %125 = vmatmul.f32.gmra.mxu0 %v107
    %v126 = vpop.f32.mrf.mxu0
    %v127 = vadd.f32 0.0, %v126
    %128 = vdwg.mxu0
    %v129 = vmax.f32 %v127, 0.0
    %v130 = vld [vmem:[%s2] sm:$0x3]
    %vm131 = vcmask 15360
    %v133 = vsel %vm131, %v129, 0
    %vm135 = vcmask 1041408
    %v137 = vsel %vm135, %v130, 0
    %139 = vmatpush.msra.mxu0 0.0
    %140 = vmatpush.msra.mxu0 0.0
    %141 = vmatpush.msra.mxu0 0.0
    %142 = vmatpush.msra.mxu0 0.0
    %143 = vmatpush.msra.mxu0 0.0
    %144 = vmatpush.msra.mxu0 0.0
    %145 = vmatpush.msra.mxu0 0.0
    %146 = vmatpush.msra.mxu0 0.0
    %147 = vmatpush.msra.mxu0 0.0
    %148 = vmatpush.msra.mxu0 0.0
    %149 = vmatpush.msra.mxu0 0.0
    %150 = vmatpush.msra.mxu0 0.0
    %151 = vmatpush.msra.mxu0 0.0
    %152 = vmatpush.msra.mxu0 0.0
    %153 = vmatpush.msra.mxu0 0.0
    %154 = vmatpush.msra.mxu0 %v137
    %155 = vmatmul.f32.gmra.mxu0 %v133
    %v156 = vpop.f32.mrf.mxu0
    %v157 = vadd.f32 0.0, %v156
    %158 = vdwg.mxu0
    %v159 = vxor.u32 %v157, 2147483648
    %v160 = vmul.f32 %v159, 1.442695
    %v161 = vpow.pop %v160
    %v162 = vadd.f32 %v161, 1.0
    %v163 = vrcp.pop %v162
    %v164 = vmul.f32 %v162, %v163
    %v165 = vsub.f32 1.0, %v164
    %v166 = vmul.f32 %v163, %v165
    %v167 = vadd.f32 %v163, %v166
    %vm168 = vweird.f32 %v162
    %vm169 = vweird.f32 %v163
    %vm170 = vmor %vm168, %vm169
    %v171 = vsel %vm170, %v163, %v167
    %v172 = vand.u32 2147483647, %v162
    %vm173 = vcmp.eq.f32.partialorder %v172, 8.507059e+37
    %v174 = vand.u32 %v162, 2147483648
    %v175 = vor.u32 1.1754944e-38, %v174
    %v176 = vsel %vm173, %v175, %v171
    %v177 = vmul.f32 1.0, %v176
    %178 = vst.msk [vmem:[%s3] sm:$0x3] %vm95, %v177
  $region21: #{se_layer.2} parent=0 // pred_fallthru
    _
  // Predicated region
  $region22: #{se_layer.2} parent=0 // pred_check
    _
  $region23: #{se_layer.2} parent=0 // pred_check_branch
    %180 = sbr.rel (0) target = $region25
  $region24: #{se_layer.2} parent=0 // pred_region
    _
  $region25: #{se_layer.2} parent=0 // pred_fallthru
    _
  // Predicated region
  $region26: #{se_layer.2} parent=0 // pred_check
    _
  $region27: #{se_layer.2} parent=0 // pred_check_branch
    %182 = sbr.rel (0) target = $region29
  $region28: #{se_layer.2} parent=0 // pred_region
    _
  $region29: #{se_layer.2} parent=0 // pred_fallthru
    _

</llo_original>
